<compile_context>
chip_gen: v6e
topology: v6e:2x2x1
jax: 0.10.0
libtpu: 0.0.40
codegen_flags: <defaults>
</compile_context>

<pallas_src>
import functools

import jax
import jax.numpy as jnp
from jax.experimental import pallas as pl
from jax.experimental.pallas import tpu as pltpu


# ------------------------------ Pallas kernel ------------------------------ #

def _fuse_kernel(x_ref, p_ref, wqk_ref, bqk_ref, wga_ref, wgb_ref, bg_ref,
                 xo_ref, po_ref, *, C, H, W):
    N = H * W
    xf = x_ref[0]                      # (C, N) f32
    pf = p_ref[0]                      # (C, N) f32

    # Column index of every flat spatial position (lane iota mod W); used to
    # zero conv taps that would read across an image-row boundary.
    lane = jax.lax.broadcasted_iota(jnp.int32, (1, N), 1)
    if W & (W - 1) == 0:               # power-of-two width: cheap bitwise and
        col = jnp.bitwise_and(lane, W - 1)
    else:
        col = lane % W
    m_left = (col >= 1).astype(jnp.float32)        # valid lanes when ox == -1
    m_right = (col <= W - 2).astype(jnp.float32)   # valid lanes when ox == +1

    def shift(a, d):
        # s[:, n] = a[:, n + d], zero outside [0, N)   (flat spatial shift)
        if d == 0:
            return a
        z = jnp.zeros((a.shape[0], abs(d)), a.dtype)
        if d > 0:
            return jnp.concatenate([a[:, d:], z], axis=1)
        return jnp.concatenate([z, a[:, :d]], axis=1)

    def taps(a):
        # Nine zero-padded 3x3 conv taps of the (C, N) slab, tap-major order
        # (tap = (oy+1)*3 + (ox+1)), matching the host-side weight reshape.
        out = []
        for oy in (-1, 0, 1):
            for ox in (-1, 0, 1):
                s = shift(a, oy * W + ox)
                if ox == -1:
                    s = s * m_left
                elif ox == 1:
                    s = s * m_right
                out.append(s)
        return out

    # --- query/key convs as one block-diagonal matmul, sigmoid attention --- #
    p_xp = jnp.concatenate(taps(xf) + taps(pf), axis=0)        # (18C, N) f32
    p_xp_bf = p_xp.astype(jnp.bfloat16)
    qk = jnp.dot(wqk_ref[...], p_xp_bf,
                 preferred_element_type=jnp.float32) + bqk_ref[...]  # (2C, N)
    att = jax.nn.sigmoid(qk[:C] * qk[C:])                      # (C, N) f32
    ax = xf * att                                              # attention_x
    ap = pf * att                                              # attention_p

    # --- gamma1/gamma2 convs (two block-diagonal matmuls) + gated fusion --- #
    p_aa_bf = jnp.concatenate(taps(ax) + taps(ap), axis=0).astype(jnp.bfloat16)
    gates = (jnp.dot(wga_ref[...], p_xp_bf, preferred_element_type=jnp.float32)
             + jnp.dot(wgb_ref[...], p_aa_bf, preferred_element_type=jnp.float32)
             + bg_ref[...])                                    # (4, N) f32
    # rows: 0,1 = x_gamma[:, 0], x_gamma[:, 1]; 2,3 = p_gamma[:, 0], p_gamma[:, 1]

    xo_ref[0] = xf * gates[0:1] + ax * gates[1:2]
    po_ref[0] = pf * gates[2:3] + ap * gates[3:4]


# -------------------------------- JAX glue --------------------------------- #

def _w2m(w):
    """Conv weight (O, I, 3, 3) -> matmul weight (O, 9*I), tap-major/ch-minor."""
    O, I, KH, KW = w.shape
    return jnp.transpose(w, (0, 2, 3, 1)).reshape(O, KH * KW * I)


def fuse_module_forward(x, prior, params):
    """x, prior: (B, C, H, W) float32 (NCHW). Returns (x_out, prior_out)."""
    B, C, H, W = x.shape
    N = H * W
    f32, bf16 = jnp.float32, jnp.bfloat16

    # query/key convs merged into one block-diagonal matmul weight.
    wqk = jnp.zeros((2 * C, 18 * C), f32)
    wqk = wqk.at[:C, :9 * C].set(_w2m(params["wq"]))
    wqk = wqk.at[C:, 9 * C:].set(_w2m(params["wk"]))
    bqk = jnp.concatenate([params["bq"], params["bk"]]).reshape(2 * C, 1)

    # gamma1/gamma2 merged:  gates = wga @ [taps(x); taps(p)]
    #                              + wgb @ [taps(att_x); taps(att_p)] + bg
    wg1, wg2 = params["wg1"], params["wg2"]
    wga = jnp.zeros((4, 18 * C), f32)
    wga = wga.at[0:2, :9 * C].set(_w2m(wg1[:, :C]))     # gamma1 on x
    wga = wga.at[2:4, 9 * C:].set(_w2m(wg2[:, :C]))     # gamma2 on prior
    wgb = jnp.zeros((4, 18 * C), f32)
    wgb = wgb.at[0:2, :9 * C].set(_w2m(wg1[:, C:]))     # gamma1 on attention_x
    wgb = wgb.at[2:4, 9 * C:].set(_w2m(wg2[:, C:]))     # gamma2 on attention_p
    bg = jnp.concatenate([params["bg1"], params["bg2"]]).reshape(4, 1)

    x_f = x.reshape(B, C, N)
    p_f = prior.reshape(B, C, N)

    def per_b(shape):   # one batch slab per grid step, lane-dense last dim N
        return pl.BlockSpec((1,) + shape[1:], lambda b: (b, 0, 0))

    def full2d(shape):  # weights / biases, same (resident) block every step
        return pl.BlockSpec(shape, lambda b: (0, 0))

    kernel = functools.partial(_fuse_kernel, C=C, H=H, W=W)

    xo_f, po_f = pl.pallas_call(
        kernel,
        out_shape=(jax.ShapeDtypeStruct((B, C, N), f32),
                   jax.ShapeDtypeStruct((B, C, N), f32)),
        grid=(B,),
        in_specs=[per_b((B, C, N)), per_b((B, C, N)),
                  full2d((2 * C, 18 * C)), full2d((2 * C, 1)),
                  full2d((4, 18 * C)), full2d((4, 18 * C)), full2d((4, 1))],
        out_specs=(per_b((B, C, N)), per_b((B, C, N))),
        compiler_params=pltpu.CompilerParams(
            dimension_semantics=("parallel",)),   # batch across TCs on v7x
    )(x_f, p_f, wqk.astype(bf16), bqk, wga.astype(bf16), wgb.astype(bf16), bg)

    return xo_f.reshape(B, C, H, W), po_f.reshape(B, C, H, W)


# --------------------------- pure-JAX reference ----------------------------- #

def _conv3x3_ref(x, w, b):
    out = jax.lax.conv_general_dilated(
        x, w, window_strides=(1, 1), padding=((1, 1), (1, 1)),
        dimension_numbers=("NCHW", "OIHW", "NCHW"),
        precision=jax.lax.Precision.HIGHEST)
    return out + b.reshape(1, -1, 1, 1)


def fuse_module_ref(x, prior, params):
    x_q = _conv3x3_ref(x, params["wq"], params["bq"])
    p_k = _conv3x3_ref(prior, params["wk"], params["bk"])
    att = jax.nn.sigmoid(x_q * p_k)
    ax = x * att
    ap = prior * att
    xg = _conv3x3_ref(jnp.concatenate([x, ax], axis=1), params["wg1"], params["bg1"])
    x_out = x * xg[:, 0:1] + ax * xg[:, 1:2]
    pg = _conv3x3_ref(jnp.concatenate([prior, ap], axis=1), params["wg2"], params["bg2"])
    p_out = prior * pg[:, 0:1] + ap * pg[:, 1:2]
    return x_out, p_out


# ----------------------------------- main ----------------------------------- #

if __name__ == "__main__":
    key = jax.random.PRNGKey(0)
    B, C, H, W = 2, 8, 16, 16        # small synthetic shapes (in_dim = C = 8)
    ks = jax.random.split(key, 10)

    x = jax.random.normal(ks[0], (B, C, H, W), jnp.float32)
    prior = jax.random.normal(ks[1], (B, C, H, W), jnp.float32)

    s = 0.05  # deterministic synthetic "checkpoint": small-scale gaussian weights
    params = dict(
        wq=s * jax.random.normal(ks[2], (C, C, 3, 3), jnp.float32),
        bq=s * jax.random.normal(ks[3], (C,), jnp.float32),
        wk=s * jax.random.normal(ks[4], (C, C, 3, 3), jnp.float32),
        bk=s * jax.random.normal(ks[5], (C,), jnp.float32),
        wg1=s * jax.random.normal(ks[6], (2, 2 * C, 3, 3), jnp.float32),
        bg1=s * jax.random.normal(ks[7], (2,), jnp.float32),
        wg2=s * jax.random.normal(ks[8], (2, 2 * C, 3, 3), jnp.float32),
        bg2=s * jax.random.normal(ks[9], (2,), jnp.float32),
    )

    x_out, prior_out = jax.jit(fuse_module_forward)(x, prior, params)
    jax.block_until_ready((x_out, prior_out))

    x_ref, prior_ref = fuse_module_ref(x, prior, params)
    assert x_out.shape == (B, C, H, W) and prior_out.shape == (B, C, H, W)
    assert jnp.allclose(x_out, x_ref, atol=2e-2, rtol=2e-2), \
        float(jnp.max(jnp.abs(x_out - x_ref)))
    assert jnp.allclose(prior_out, prior_ref, atol=2e-2, rtol=2e-2), \
        float(jnp.max(jnp.abs(prior_out - prior_ref)))

    print("KERNEL_OK")
</pallas_src>

<mosaic_0001>
module attributes {stable_mosaic.version = 11 : i64} {
  func.func @_fuse_kernel(%arg0: i32, %arg1: memref<1x8x256xf32, #tpu.memory_space<vmem>>, %arg2: memref<1x8x256xf32, #tpu.memory_space<vmem>>, %arg3: memref<16x144xbf16, #tpu.memory_space<vmem>>, %arg4: memref<16x1xf32, #tpu.memory_space<vmem>>, %arg5: memref<4x144xbf16, #tpu.memory_space<vmem>>, %arg6: memref<4x144xbf16, #tpu.memory_space<vmem>>, %arg7: memref<4x1xf32, #tpu.memory_space<vmem>>, %arg8: memref<1x8x256xf32, #tpu.memory_space<vmem>>, %arg9: memref<1x8x256xf32, #tpu.memory_space<vmem>>) attributes {dimension_semantics = [#tpu.dimension_semantics<parallel>], iteration_bounds = array<i64: 2>, scalar_prefetch = 0 : i64, scratch_operands = 0 : i64, tpu.core_type = #tpu.core_type<tc>, window_params = [{transform_indices = @transform_0, window_bounds = array<i64: 1, 8, 256>}, {transform_indices = @transform_1, window_bounds = array<i64: 1, 8, 256>}, {pipeline_mode = #tpu.pipeline_mode<synchronous>, transform_indices = @transform_2, window_bounds = array<i64: 16, 144>}, {pipeline_mode = #tpu.pipeline_mode<synchronous>, transform_indices = @transform_3, window_bounds = array<i64: 16, 1>}, {pipeline_mode = #tpu.pipeline_mode<synchronous>, transform_indices = @transform_4, window_bounds = array<i64: 4, 144>}, {pipeline_mode = #tpu.pipeline_mode<synchronous>, transform_indices = @transform_5, window_bounds = array<i64: 4, 144>}, {pipeline_mode = #tpu.pipeline_mode<synchronous>, transform_indices = @transform_6, window_bounds = array<i64: 4, 1>}, {transform_indices = @transform_7, window_bounds = array<i64: 1, 8, 256>}, {transform_indices = @transform_8, window_bounds = array<i64: 1, 8, 256>}]} {
    %c0 = arith.constant 0 : index
    %c0_0 = arith.constant 0 : index
    %c0_1 = arith.constant 0 : index
    %0 = vector.load %arg1[%c0, %c0_0, %c0_1] : memref<1x8x256xf32, #tpu.memory_space<vmem>>, vector<1x8x256xf32>
    %1 = vector.shape_cast %0 : vector<1x8x256xf32> to vector<8x256xf32>
    %c0_2 = arith.constant 0 : index
    %c0_3 = arith.constant 0 : index
    %c0_4 = arith.constant 0 : index
    %2 = vector.load %arg2[%c0_2, %c0_3, %c0_4] : memref<1x8x256xf32, #tpu.memory_space<vmem>>, vector<1x8x256xf32>
    %3 = vector.shape_cast %2 : vector<1x8x256xf32> to vector<8x256xf32>
    %4 = tpu.iota {dimensions = array<i32: 1>} : vector<1x256xi32>
    %c15_i32 = arith.constant 15 : i32
    %5 = vector.broadcast %c15_i32 : i32 to vector<1x256xi32>
    %6 = arith.andi %4, %5 : vector<1x256xi32>
    %c1_i32 = arith.constant 1 : i32
    %7 = vector.broadcast %c1_i32 : i32 to vector<1x256xi32>
    %8 = arith.cmpi sge, %6, %7 : vector<1x256xi32>
    %9 = arith.extui %8 : vector<1x256xi1> to vector<1x256xi32>
    %10 = arith.sitofp %9 : vector<1x256xi32> to vector<1x256xf32>
    %c14_i32 = arith.constant 14 : i32
    %11 = vector.broadcast %c14_i32 : i32 to vector<1x256xi32>
    %12 = arith.cmpi sle, %6, %11 : vector<1x256xi32>
    %13 = arith.extui %12 : vector<1x256xi1> to vector<1x256xi32>
    %14 = arith.sitofp %13 : vector<1x256xi32> to vector<1x256xf32>
    %cst = arith.constant 0.000000e+00 : f32
    %15 = vector.broadcast %cst : f32 to vector<8x17xf32>
    %16 = vector.extract_strided_slice %1 {offsets = [0, 0], sizes = [8, 239], strides = [1, 1]} : vector<8x256xf32> to vector<8x239xf32>
    %17 = tpu.concatenate %15, %16 in 1 : vector<8x17xf32>, vector<8x239xf32> -> vector<8x256xf32>
    %18 = vector.broadcast %10 : vector<1x256xf32> to vector<8x256xf32>
    %19 = arith.mulf %17, %18 : vector<8x256xf32>
    %cst_5 = arith.constant 0.000000e+00 : f32
    %20 = vector.broadcast %cst_5 : f32 to vector<8x16xf32>
    %21 = vector.extract_strided_slice %1 {offsets = [0, 0], sizes = [8, 240], strides = [1, 1]} : vector<8x256xf32> to vector<8x240xf32>
    %22 = tpu.concatenate %20, %21 in 1 : vector<8x16xf32>, vector<8x240xf32> -> vector<8x256xf32>
    %cst_6 = arith.constant 0.000000e+00 : f32
    %23 = vector.broadcast %cst_6 : f32 to vector<8x15xf32>
    %24 = vector.extract_strided_slice %1 {offsets = [0, 0], sizes = [8, 241], strides = [1, 1]} : vector<8x256xf32> to vector<8x241xf32>
    %25 = tpu.concatenate %23, %24 in 1 : vector<8x15xf32>, vector<8x241xf32> -> vector<8x256xf32>
    %26 = vector.broadcast %14 : vector<1x256xf32> to vector<8x256xf32>
    %27 = arith.mulf %25, %26 : vector<8x256xf32>
    %cst_7 = arith.constant 0.000000e+00 : f32
    %28 = vector.broadcast %cst_7 : f32 to vector<8x1xf32>
    %29 = vector.extract_strided_slice %1 {offsets = [0, 0], sizes = [8, 255], strides = [1, 1]} : vector<8x256xf32> to vector<8x255xf32>
    %30 = tpu.concatenate %28, %29 in 1 : vector<8x1xf32>, vector<8x255xf32> -> vector<8x256xf32>
    %31 = vector.broadcast %10 : vector<1x256xf32> to vector<8x256xf32>
    %32 = arith.mulf %30, %31 : vector<8x256xf32>
    %cst_8 = arith.constant 0.000000e+00 : f32
    %33 = vector.broadcast %cst_8 : f32 to vector<8x1xf32>
    %34 = vector.extract_strided_slice %1 {offsets = [0, 1], sizes = [8, 255], strides = [1, 1]} : vector<8x256xf32> to vector<8x255xf32>
    %35 = tpu.concatenate %34, %33 in 1 : vector<8x255xf32>, vector<8x1xf32> -> vector<8x256xf32>
    %36 = vector.broadcast %14 : vector<1x256xf32> to vector<8x256xf32>
    %37 = arith.mulf %35, %36 : vector<8x256xf32>
    %cst_9 = arith.constant 0.000000e+00 : f32
    %38 = vector.broadcast %cst_9 : f32 to vector<8x15xf32>
    %39 = vector.extract_strided_slice %1 {offsets = [0, 15], sizes = [8, 241], strides = [1, 1]} : vector<8x256xf32> to vector<8x241xf32>
    %40 = tpu.concatenate %39, %38 in 1 : vector<8x241xf32>, vector<8x15xf32> -> vector<8x256xf32>
    %41 = vector.broadcast %10 : vector<1x256xf32> to vector<8x256xf32>
    %42 = arith.mulf %40, %41 : vector<8x256xf32>
    %cst_10 = arith.constant 0.000000e+00 : f32
    %43 = vector.broadcast %cst_10 : f32 to vector<8x16xf32>
    %44 = vector.extract_strided_slice %1 {offsets = [0, 16], sizes = [8, 240], strides = [1, 1]} : vector<8x256xf32> to vector<8x240xf32>
    %45 = tpu.concatenate %44, %43 in 1 : vector<8x240xf32>, vector<8x16xf32> -> vector<8x256xf32>
    %cst_11 = arith.constant 0.000000e+00 : f32
    %46 = vector.broadcast %cst_11 : f32 to vector<8x17xf32>
    %47 = vector.extract_strided_slice %1 {offsets = [0, 17], sizes = [8, 239], strides = [1, 1]} : vector<8x256xf32> to vector<8x239xf32>
    %48 = tpu.concatenate %47, %46 in 1 : vector<8x239xf32>, vector<8x17xf32> -> vector<8x256xf32>
    %49 = vector.broadcast %14 : vector<1x256xf32> to vector<8x256xf32>
    %50 = arith.mulf %48, %49 : vector<8x256xf32>
    %cst_12 = arith.constant 0.000000e+00 : f32
    %51 = vector.broadcast %cst_12 : f32 to vector<8x17xf32>
    %52 = vector.extract_strided_slice %3 {offsets = [0, 0], sizes = [8, 239], strides = [1, 1]} : vector<8x256xf32> to vector<8x239xf32>
    %53 = tpu.concatenate %51, %52 in 1 : vector<8x17xf32>, vector<8x239xf32> -> vector<8x256xf32>
    %54 = vector.broadcast %10 : vector<1x256xf32> to vector<8x256xf32>
    %55 = arith.mulf %53, %54 : vector<8x256xf32>
    %cst_13 = arith.constant 0.000000e+00 : f32
    %56 = vector.broadcast %cst_13 : f32 to vector<8x16xf32>
    %57 = vector.extract_strided_slice %3 {offsets = [0, 0], sizes = [8, 240], strides = [1, 1]} : vector<8x256xf32> to vector<8x240xf32>
    %58 = tpu.concatenate %56, %57 in 1 : vector<8x16xf32>, vector<8x240xf32> -> vector<8x256xf32>
    %cst_14 = arith.constant 0.000000e+00 : f32
    %59 = vector.broadcast %cst_14 : f32 to vector<8x15xf32>
    %60 = vector.extract_strided_slice %3 {offsets = [0, 0], sizes = [8, 241], strides = [1, 1]} : vector<8x256xf32> to vector<8x241xf32>
    %61 = tpu.concatenate %59, %60 in 1 : vector<8x15xf32>, vector<8x241xf32> -> vector<8x256xf32>
    %62 = vector.broadcast %14 : vector<1x256xf32> to vector<8x256xf32>
    %63 = arith.mulf %61, %62 : vector<8x256xf32>
    %cst_15 = arith.constant 0.000000e+00 : f32
    %64 = vector.broadcast %cst_15 : f32 to vector<8x1xf32>
    %65 = vector.extract_strided_slice %3 {offsets = [0, 0], sizes = [8, 255], strides = [1, 1]} : vector<8x256xf32> to vector<8x255xf32>
    %66 = tpu.concatenate %64, %65 in 1 : vector<8x1xf32>, vector<8x255xf32> -> vector<8x256xf32>
    %67 = vector.broadcast %10 : vector<1x256xf32> to vector<8x256xf32>
    %68 = arith.mulf %66, %67 : vector<8x256xf32>
    %cst_16 = arith.constant 0.000000e+00 : f32
    %69 = vector.broadcast %cst_16 : f32 to vector<8x1xf32>
    %70 = vector.extract_strided_slice %3 {offsets = [0, 1], sizes = [8, 255], strides = [1, 1]} : vector<8x256xf32> to vector<8x255xf32>
    %71 = tpu.concatenate %70, %69 in 1 : vector<8x255xf32>, vector<8x1xf32> -> vector<8x256xf32>
    %72 = vector.broadcast %14 : vector<1x256xf32> to vector<8x256xf32>
    %73 = arith.mulf %71, %72 : vector<8x256xf32>
    %cst_17 = arith.constant 0.000000e+00 : f32
    %74 = vector.broadcast %cst_17 : f32 to vector<8x15xf32>
    %75 = vector.extract_strided_slice %3 {offsets = [0, 15], sizes = [8, 241], strides = [1, 1]} : vector<8x256xf32> to vector<8x241xf32>
    %76 = tpu.concatenate %75, %74 in 1 : vector<8x241xf32>, vector<8x15xf32> -> vector<8x256xf32>
    %77 = vector.broadcast %10 : vector<1x256xf32> to vector<8x256xf32>
    %78 = arith.mulf %76, %77 : vector<8x256xf32>
    %cst_18 = arith.constant 0.000000e+00 : f32
    %79 = vector.broadcast %cst_18 : f32 to vector<8x16xf32>
    %80 = vector.extract_strided_slice %3 {offsets = [0, 16], sizes = [8, 240], strides = [1, 1]} : vector<8x256xf32> to vector<8x240xf32>
    %81 = tpu.concatenate %80, %79 in 1 : vector<8x240xf32>, vector<8x16xf32> -> vector<8x256xf32>
    %cst_19 = arith.constant 0.000000e+00 : f32
    %82 = vector.broadcast %cst_19 : f32 to vector<8x17xf32>
    %83 = vector.extract_strided_slice %3 {offsets = [0, 17], sizes = [8, 239], strides = [1, 1]} : vector<8x256xf32> to vector<8x239xf32>
    %84 = tpu.concatenate %83, %82 in 1 : vector<8x239xf32>, vector<8x17xf32> -> vector<8x256xf32>
    %85 = vector.broadcast %14 : vector<1x256xf32> to vector<8x256xf32>
    %86 = arith.mulf %84, %85 : vector<8x256xf32>
    %87 = tpu.concatenate %19, %22, %27, %32, %1, %37, %42, %45, %50, %55, %58, %63, %68, %3, %73, %78 in 0 : vector<8x256xf32>, vector<8x256xf32>, vector<8x256xf32>, vector<8x256xf32>, vector<8x256xf32>, vector<8x256xf32>, vector<8x256xf32>, vector<8x256xf32>, vector<8x256xf32>, vector<8x256xf32>, vector<8x256xf32>, vector<8x256xf32>, vector<8x256xf32>, vector<8x256xf32>, vector<8x256xf32>, vector<8x256xf32> -> vector<128x256xf32>
    %88 = tpu.concatenate %81, %86 in 0 : vector<8x256xf32>, vector<8x256xf32> -> vector<16x256xf32>
    %89 = tpu.concatenate %87, %88 in 0 : vector<128x256xf32>, vector<16x256xf32> -> vector<144x256xf32>
    %90 = arith.truncf %89 : vector<144x256xf32> to vector<144x256xbf16>
    %c0_20 = arith.constant 0 : index
    %c0_21 = arith.constant 0 : index
    %91 = vector.load %arg3[%c0_20, %c0_21] : memref<16x144xbf16, #tpu.memory_space<vmem>>, vector<16x144xbf16>
    %cst_22 = arith.constant dense<0.000000e+00> : vector<16x256xf32>
    %92 = tpu.matmul %91, %90, %cst_22 {dimension_numbers = #tpu.dot_dimension_numbers<[1], [0], [0], [1], [0, 0, 1, 1], [], []>} : vector<16x144xbf16>, vector<144x256xbf16>, vector<16x256xf32> -> vector<16x256xf32>
    %c0_23 = arith.constant 0 : index
    %c0_24 = arith.constant 0 : index
    %93 = vector.load %arg4[%c0_23, %c0_24] : memref<16x1xf32, #tpu.memory_space<vmem>>, vector<16x1xf32>
    %94 = vector.broadcast %93 : vector<16x1xf32> to vector<16x256xf32>
    %95 = arith.addf %92, %94 : vector<16x256xf32>
    %96 = vector.extract_strided_slice %95 {offsets = [0, 0], sizes = [8, 256], strides = [1, 1]} : vector<16x256xf32> to vector<8x256xf32>
    %97 = vector.extract_strided_slice %95 {offsets = [8, 0], sizes = [8, 256], strides = [1, 1]} : vector<16x256xf32> to vector<8x256xf32>
    %98 = arith.mulf %96, %97 : vector<8x256xf32>
    %99 = arith.negf %98 : vector<8x256xf32>
    %100 = math.exp %99 : vector<8x256xf32>
    %cst_25 = arith.constant 1.000000e+00 : f32
    %101 = vector.broadcast %cst_25 : f32 to vector<8x256xf32>
    %102 = arith.addf %101, %100 : vector<8x256xf32>
    %103 = arith.divf %101, %102 : vector<8x256xf32>
    %104 = arith.mulf %1, %103 : vector<8x256xf32>
    %105 = arith.mulf %3, %103 : vector<8x256xf32>
    %cst_26 = arith.constant 0.000000e+00 : f32
    %106 = vector.broadcast %cst_26 : f32 to vector<8x17xf32>
    %107 = vector.extract_strided_slice %104 {offsets = [0, 0], sizes = [8, 239], strides = [1, 1]} : vector<8x256xf32> to vector<8x239xf32>
    %108 = tpu.concatenate %106, %107 in 1 : vector<8x17xf32>, vector<8x239xf32> -> vector<8x256xf32>
    %109 = vector.broadcast %10 : vector<1x256xf32> to vector<8x256xf32>
    %110 = arith.mulf %108, %109 : vector<8x256xf32>
    %cst_27 = arith.constant 0.000000e+00 : f32
    %111 = vector.broadcast %cst_27 : f32 to vector<8x16xf32>
    %112 = vector.extract_strided_slice %104 {offsets = [0, 0], sizes = [8, 240], strides = [1, 1]} : vector<8x256xf32> to vector<8x240xf32>
    %113 = tpu.concatenate %111, %112 in 1 : vector<8x16xf32>, vector<8x240xf32> -> vector<8x256xf32>
    %cst_28 = arith.constant 0.000000e+00 : f32
    %114 = vector.broadcast %cst_28 : f32 to vector<8x15xf32>
    %115 = vector.extract_strided_slice %104 {offsets = [0, 0], sizes = [8, 241], strides = [1, 1]} : vector<8x256xf32> to vector<8x241xf32>
    %116 = tpu.concatenate %114, %115 in 1 : vector<8x15xf32>, vector<8x241xf32> -> vector<8x256xf32>
    %117 = vector.broadcast %14 : vector<1x256xf32> to vector<8x256xf32>
    %118 = arith.mulf %116, %117 : vector<8x256xf32>
    %cst_29 = arith.constant 0.000000e+00 : f32
    %119 = vector.broadcast %cst_29 : f32 to vector<8x1xf32>
    %120 = vector.extract_strided_slice %104 {offsets = [0, 0], sizes = [8, 255], strides = [1, 1]} : vector<8x256xf32> to vector<8x255xf32>
    %121 = tpu.concatenate %119, %120 in 1 : vector<8x1xf32>, vector<8x255xf32> -> vector<8x256xf32>
    %122 = vector.broadcast %10 : vector<1x256xf32> to vector<8x256xf32>
    %123 = arith.mulf %121, %122 : vector<8x256xf32>
    %cst_30 = arith.constant 0.000000e+00 : f32
    %124 = vector.broadcast %cst_30 : f32 to vector<8x1xf32>
    %125 = vector.extract_strided_slice %104 {offsets = [0, 1], sizes = [8, 255], strides = [1, 1]} : vector<8x256xf32> to vector<8x255xf32>
    %126 = tpu.concatenate %125, %124 in 1 : vector<8x255xf32>, vector<8x1xf32> -> vector<8x256xf32>
    %127 = vector.broadcast %14 : vector<1x256xf32> to vector<8x256xf32>
    %128 = arith.mulf %126, %127 : vector<8x256xf32>
    %cst_31 = arith.constant 0.000000e+00 : f32
    %129 = vector.broadcast %cst_31 : f32 to vector<8x15xf32>
    %130 = vector.extract_strided_slice %104 {offsets = [0, 15], sizes = [8, 241], strides = [1, 1]} : vector<8x256xf32> to vector<8x241xf32>
    %131 = tpu.concatenate %130, %129 in 1 : vector<8x241xf32>, vector<8x15xf32> -> vector<8x256xf32>
    %132 = vector.broadcast %10 : vector<1x256xf32> to vector<8x256xf32>
    %133 = arith.mulf %131, %132 : vector<8x256xf32>
    %cst_32 = arith.constant 0.000000e+00 : f32
    %134 = vector.broadcast %cst_32 : f32 to vector<8x16xf32>
    %135 = vector.extract_strided_slice %104 {offsets = [0, 16], sizes = [8, 240], strides = [1, 1]} : vector<8x256xf32> to vector<8x240xf32>
    %136 = tpu.concatenate %135, %134 in 1 : vector<8x240xf32>, vector<8x16xf32> -> vector<8x256xf32>
    %cst_33 = arith.constant 0.000000e+00 : f32
    %137 = vector.broadcast %cst_33 : f32 to vector<8x17xf32>
    %138 = vector.extract_strided_slice %104 {offsets = [0, 17], sizes = [8, 239], strides = [1, 1]} : vector<8x256xf32> to vector<8x239xf32>
    %139 = tpu.concatenate %138, %137 in 1 : vector<8x239xf32>, vector<8x17xf32> -> vector<8x256xf32>
    %140 = vector.broadcast %14 : vector<1x256xf32> to vector<8x256xf32>
    %141 = arith.mulf %139, %140 : vector<8x256xf32>
    %cst_34 = arith.constant 0.000000e+00 : f32
    %142 = vector.broadcast %cst_34 : f32 to vector<8x17xf32>
    %143 = vector.extract_strided_slice %105 {offsets = [0, 0], sizes = [8, 239], strides = [1, 1]} : vector<8x256xf32> to vector<8x239xf32>
    %144 = tpu.concatenate %142, %143 in 1 : vector<8x17xf32>, vector<8x239xf32> -> vector<8x256xf32>
    %145 = vector.broadcast %10 : vector<1x256xf32> to vector<8x256xf32>
    %146 = arith.mulf %144, %145 : vector<8x256xf32>
    %cst_35 = arith.constant 0.000000e+00 : f32
    %147 = vector.broadcast %cst_35 : f32 to vector<8x16xf32>
    %148 = vector.extract_strided_slice %105 {offsets = [0, 0], sizes = [8, 240], strides = [1, 1]} : vector<8x256xf32> to vector<8x240xf32>
    %149 = tpu.concatenate %147, %148 in 1 : vector<8x16xf32>, vector<8x240xf32> -> vector<8x256xf32>
    %cst_36 = arith.constant 0.000000e+00 : f32
    %150 = vector.broadcast %cst_36 : f32 to vector<8x15xf32>
    %151 = vector.extract_strided_slice %105 {offsets = [0, 0], sizes = [8, 241], strides = [1, 1]} : vector<8x256xf32> to vector<8x241xf32>
    %152 = tpu.concatenate %150, %151 in 1 : vector<8x15xf32>, vector<8x241xf32> -> vector<8x256xf32>
    %153 = vector.broadcast %14 : vector<1x256xf32> to vector<8x256xf32>
    %154 = arith.mulf %152, %153 : vector<8x256xf32>
    %cst_37 = arith.constant 0.000000e+00 : f32
    %155 = vector.broadcast %cst_37 : f32 to vector<8x1xf32>
    %156 = vector.extract_strided_slice %105 {offsets = [0, 0], sizes = [8, 255], strides = [1, 1]} : vector<8x256xf32> to vector<8x255xf32>
    %157 = tpu.concatenate %155, %156 in 1 : vector<8x1xf32>, vector<8x255xf32> -> vector<8x256xf32>
    %158 = vector.broadcast %10 : vector<1x256xf32> to vector<8x256xf32>
    %159 = arith.mulf %157, %158 : vector<8x256xf32>
    %cst_38 = arith.constant 0.000000e+00 : f32
    %160 = vector.broadcast %cst_38 : f32 to vector<8x1xf32>
    %161 = vector.extract_strided_slice %105 {offsets = [0, 1], sizes = [8, 255], strides = [1, 1]} : vector<8x256xf32> to vector<8x255xf32>
    %162 = tpu.concatenate %161, %160 in 1 : vector<8x255xf32>, vector<8x1xf32> -> vector<8x256xf32>
    %163 = vector.broadcast %14 : vector<1x256xf32> to vector<8x256xf32>
    %164 = arith.mulf %162, %163 : vector<8x256xf32>
    %cst_39 = arith.constant 0.000000e+00 : f32
    %165 = vector.broadcast %cst_39 : f32 to vector<8x15xf32>
    %166 = vector.extract_strided_slice %105 {offsets = [0, 15], sizes = [8, 241], strides = [1, 1]} : vector<8x256xf32> to vector<8x241xf32>
    %167 = tpu.concatenate %166, %165 in 1 : vector<8x241xf32>, vector<8x15xf32> -> vector<8x256xf32>
    %168 = vector.broadcast %10 : vector<1x256xf32> to vector<8x256xf32>
    %169 = arith.mulf %167, %168 : vector<8x256xf32>
    %cst_40 = arith.constant 0.000000e+00 : f32
    %170 = vector.broadcast %cst_40 : f32 to vector<8x16xf32>
    %171 = vector.extract_strided_slice %105 {offsets = [0, 16], sizes = [8, 240], strides = [1, 1]} : vector<8x256xf32> to vector<8x240xf32>
    %172 = tpu.concatenate %171, %170 in 1 : vector<8x240xf32>, vector<8x16xf32> -> vector<8x256xf32>
    %cst_41 = arith.constant 0.000000e+00 : f32
    %173 = vector.broadcast %cst_41 : f32 to vector<8x17xf32>
    %174 = vector.extract_strided_slice %105 {offsets = [0, 17], sizes = [8, 239], strides = [1, 1]} : vector<8x256xf32> to vector<8x239xf32>
    %175 = tpu.concatenate %174, %173 in 1 : vector<8x239xf32>, vector<8x17xf32> -> vector<8x256xf32>
    %176 = vector.broadcast %14 : vector<1x256xf32> to vector<8x256xf32>
    %177 = arith.mulf %175, %176 : vector<8x256xf32>
    %178 = tpu.concatenate %110, %113, %118, %123, %104, %128, %133, %136, %141, %146, %149, %154, %159, %105, %164, %169 in 0 : vector<8x256xf32>, vector<8x256xf32>, vector<8x256xf32>, vector<8x256xf32>, vector<8x256xf32>, vector<8x256xf32>, vector<8x256xf32>, vector<8x256xf32>, vector<8x256xf32>, vector<8x256xf32>, vector<8x256xf32>, vector<8x256xf32>, vector<8x256xf32>, vector<8x256xf32>, vector<8x256xf32>, vector<8x256xf32> -> vector<128x256xf32>
    %179 = tpu.concatenate %172, %177 in 0 : vector<8x256xf32>, vector<8x256xf32> -> vector<16x256xf32>
    %180 = tpu.concatenate %178, %179 in 0 : vector<128x256xf32>, vector<16x256xf32> -> vector<144x256xf32>
    %181 = arith.truncf %180 : vector<144x256xf32> to vector<144x256xbf16>
    %c0_42 = arith.constant 0 : index
    %c0_43 = arith.constant 0 : index
    %182 = vector.load %arg5[%c0_42, %c0_43] : memref<4x144xbf16, #tpu.memory_space<vmem>>, vector<4x144xbf16>
    %cst_44 = arith.constant dense<0.000000e+00> : vector<4x256xf32>
    %183 = tpu.matmul %182, %90, %cst_44 {dimension_numbers = #tpu.dot_dimension_numbers<[1], [0], [0], [1], [0, 0, 1, 1], [], []>} : vector<4x144xbf16>, vector<144x256xbf16>, vector<4x256xf32> -> vector<4x256xf32>
    %c0_45 = arith.constant 0 : index
    %c0_46 = arith.constant 0 : index
    %184 = vector.load %arg6[%c0_45, %c0_46] : memref<4x144xbf16, #tpu.memory_space<vmem>>, vector<4x144xbf16>
    %cst_47 = arith.constant dense<0.000000e+00> : vector<4x256xf32>
    %185 = tpu.matmul %184, %181, %cst_47 {dimension_numbers = #tpu.dot_dimension_numbers<[1], [0], [0], [1], [0, 0, 1, 1], [], []>} : vector<4x144xbf16>, vector<144x256xbf16>, vector<4x256xf32> -> vector<4x256xf32>
    %186 = arith.addf %183, %185 : vector<4x256xf32>
    %c0_48 = arith.constant 0 : index
    %c0_49 = arith.constant 0 : index
    %187 = vector.load %arg7[%c0_48, %c0_49] : memref<4x1xf32, #tpu.memory_space<vmem>>, vector<4x1xf32>
    %188 = vector.broadcast %187 : vector<4x1xf32> to vector<4x256xf32>
    %189 = arith.addf %186, %188 : vector<4x256xf32>
    %190 = vector.extract_strided_slice %189 {offsets = [0, 0], sizes = [1, 256], strides = [1, 1]} : vector<4x256xf32> to vector<1x256xf32>
    %191 = vector.broadcast %190 : vector<1x256xf32> to vector<8x256xf32>
    %192 = arith.mulf %1, %191 : vector<8x256xf32>
    %193 = vector.extract_strided_slice %189 {offsets = [1, 0], sizes = [1, 256], strides = [1, 1]} : vector<4x256xf32> to vector<1x256xf32>
    %194 = vector.broadcast %193 : vector<1x256xf32> to vector<8x256xf32>
    %195 = arith.mulf %104, %194 : vector<8x256xf32>
    %196 = arith.addf %192, %195 : vector<8x256xf32>
    %c0_50 = arith.constant 0 : index
    %c0_51 = arith.constant 0 : index
    %c0_52 = arith.constant 0 : index
    %197 = vector.load %arg8[%c0_50, %c0_51, %c0_52] : memref<1x8x256xf32, #tpu.memory_space<vmem>>, vector<1x8x256xf32>
    %198 = vector.shape_cast %197 : vector<1x8x256xf32> to vector<8x256xf32>
    %199 = vector.shape_cast %196 : vector<8x256xf32> to vector<1x8x256xf32>
    tpu.vector_store %arg8[%c0_50, %c0_51, %c0_52], %199 {strides = array<i32>} : memref<1x8x256xf32, #tpu.memory_space<vmem>>, vector<1x8x256xf32>,
    %200 = vector.extract_strided_slice %189 {offsets = [2, 0], sizes = [1, 256], strides = [1, 1]} : vector<4x256xf32> to vector<1x256xf32>
    %201 = vector.broadcast %200 : vector<1x256xf32> to vector<8x256xf32>
    %202 = arith.mulf %3, %201 : vector<8x256xf32>
    %203 = vector.extract_strided_slice %189 {offsets = [3, 0], sizes = [1, 256], strides = [1, 1]} : vector<4x256xf32> to vector<1x256xf32>
    %204 = vector.broadcast %203 : vector<1x256xf32> to vector<8x256xf32>
    %205 = arith.mulf %105, %204 : vector<8x256xf32>
    %206 = arith.addf %202, %205 : vector<8x256xf32>
    %c0_53 = arith.constant 0 : index
    %c0_54 = arith.constant 0 : index
    %c0_55 = arith.constant 0 : index
    %207 = vector.load %arg9[%c0_53, %c0_54, %c0_55] : memref<1x8x256xf32, #tpu.memory_space<vmem>>, vector<1x8x256xf32>
    %208 = vector.shape_cast %207 : vector<1x8x256xf32> to vector<8x256xf32>
    %209 = vector.shape_cast %206 : vector<8x256xf32> to vector<1x8x256xf32>
    tpu.vector_store %arg9[%c0_53, %c0_54, %c0_55], %209 {strides = array<i32>} : memref<1x8x256xf32, #tpu.memory_space<vmem>>, vector<1x8x256xf32>,
    return
  }
  func.func @transform_0(%arg0: i32) -> (i32, i32, i32) {
    %c0_i32 = arith.constant 0 : i32
    %c0_i32_0 = arith.constant 0 : i32
    %c0_i32_1 = arith.constant 0 : i32
    return %arg0, %c0_i32, %c0_i32_0 : i32, i32, i32
  }
  func.func @transform_1(%arg0: i32) -> (i32, i32, i32) {
    %c0_i32 = arith.constant 0 : i32
    %c0_i32_0 = arith.constant 0 : i32
    %c0_i32_1 = arith.constant 0 : i32
    return %arg0, %c0_i32, %c0_i32_0 : i32, i32, i32
  }
  func.func @transform_2(%arg0: i32) -> (i32, i32) {
    %c0_i32 = arith.constant 0 : i32
    %c0_i32_0 = arith.constant 0 : i32
    %c0_i32_1 = arith.constant 0 : i32
    return %c0_i32, %c0_i32_0 : i32, i32
  }
  func.func @transform_3(%arg0: i32) -> (i32, i32) {
    %c0_i32 = arith.constant 0 : i32
    %c0_i32_0 = arith.constant 0 : i32
    %c0_i32_1 = arith.constant 0 : i32
    return %c0_i32, %c0_i32_0 : i32, i32
  }
  func.func @transform_4(%arg0: i32) -> (i32, i32) {
    %c0_i32 = arith.constant 0 : i32
    %c0_i32_0 = arith.constant 0 : i32
    %c0_i32_1 = arith.constant 0 : i32
    return %c0_i32, %c0_i32_0 : i32, i32
  }
  func.func @transform_5(%arg0: i32) -> (i32, i32) {
    %c0_i32 = arith.constant 0 : i32
    %c0_i32_0 = arith.constant 0 : i32
    %c0_i32_1 = arith.constant 0 : i32
    return %c0_i32, %c0_i32_0 : i32, i32
  }
  func.func @transform_6(%arg0: i32) -> (i32, i32) {
    %c0_i32 = arith.constant 0 : i32
    %c0_i32_0 = arith.constant 0 : i32
    %c0_i32_1 = arith.constant 0 : i32
    return %c0_i32, %c0_i32_0 : i32, i32
  }
  func.func @transform_7(%arg0: i32) -> (i32, i32, i32) {
    %c0_i32 = arith.constant 0 : i32
    %c0_i32_0 = arith.constant 0 : i32
    %c0_i32_1 = arith.constant 0 : i32
    return %arg0, %c0_i32, %c0_i32_0 : i32, i32, i32
  }
  func.func @transform_8(%arg0: i32) -> (i32, i32, i32) {
    %c0_i32 = arith.constant 0 : i32
    %c0_i32_0 = arith.constant 0 : i32
    %c0_i32_1 = arith.constant 0 : i32
    return %arg0, %c0_i32, %c0_i32_0 : i32, i32, i32
  }
}

</mosaic_0001>

<llo_original>
// kernel: fuse_module_forward.1
$region0: #{fuse_module_forward.1}
  #allocation0 [shape = 'u32[]', space=smem, size = 0x4, offset = 0x4, fixed_abs, tag = 'smem constant byte address 0x4 - core index']
  #allocation1 [shape = 'u32[144,128]{1,0:T(1,128)}', space=vmem, size = 0x12000, scoped, tag = 'internal scratch']
  %s0 = inlined_call_operand.vmem [shape: f32[2,8,256], index: 0, kind: input, shape index: {}]
  %s1 = inlined_call_operand.vmem [shape: f32[2,8,256], index: 1, kind: input, shape index: {}]
  %s2 = inlined_call_operand.vmem [shape: bf16[16,144], index: 2, kind: input, shape index: {}]
  %s3 = inlined_call_operand.vmem [shape: f32[16,1], index: 3, kind: input, shape index: {}]
  %s4 = inlined_call_operand.vmem [shape: bf16[4,144], index: 4, kind: input, shape index: {}]
  %s5 = inlined_call_operand.vmem [shape: bf16[4,144], index: 5, kind: input, shape index: {}]
  %s6 = inlined_call_operand.vmem [shape: f32[4,1], index: 6, kind: input, shape index: {}]
  %s7 = inlined_call_operand.vmem [shape: f32[2,8,256], index: 7, kind: output, shape index: {0}]
  %s8 = inlined_call_operand.vmem [shape: f32[2,8,256], index: 8, kind: output, shape index: {1}]
  %9 = xla_tuple %s7, %s8
  %s10 = sld [smem:[#allocation0]]
  $region69: #{fuse_module_forward.1} parent=0
    _
  %s12 = ssub.s32 1, %s10
  %s13 = scalar_select 0, %s12, %s10
  loop: start=0, step=1, limit=4
  $region2: #{fuse_module_forward.1} parent=0 // loop_pre_header
    _
  $region3: #{fuse_module_forward.1} parent=0 // loop_header
    %s15 = sphi 0, %s19
    %p16 = scmp.ge.s32.totalorder %s15, 4
    %s25 = sphi 0, %s27
    %s28 = sphi 0, %s25
    %s29 = sphi 0, %s28
    %s45 = sphi 0, %s29
    %s51 = sphi 0, %s53
    %s54 = sphi 0, %s51
    %s55 = sphi 0, %s54
    %s71 = sphi 0, %s55
    %s75 = sphi 0, %s75
    %s77 = sphi 0, %s75
    %s78 = sphi 0, %s77
    %s92 = sphi 0, %s78
    %s96 = sphi 0, %s96
    %s98 = sphi 0, %s96
    %s99 = sphi 0, %s98
    %s113 = sphi 0, %s99
    %s117 = sphi 0, %s117
    %s119 = sphi 0, %s117
    %s120 = sphi 0, %s119
    %s134 = sphi 0, %s120
    %s138 = sphi 0, %s138
    %s140 = sphi 0, %s138
    %s141 = sphi 0, %s140
    %s155 = sphi 0, %s141
    %s159 = sphi 0, %s159
    %s161 = sphi 0, %s159
    %s162 = sphi 0, %s161
    %s176 = sphi 0, %s162
    %s182 = sphi 0, %s184
    %s185 = sphi 0, %s182
    %s186 = sphi 0, %s185
    %s202 = sphi 0, %s186
    %s208 = sphi 0, %s210
    %s211 = sphi 0, %s208
    %s212 = sphi 0, %s211
    %s228 = sphi 0, %s212
  $region4: #{fuse_module_forward.1} parent=0 // loop_header_branch
    %18 = sbr.rel (%p16) target = $region8
  $region5: #{fuse_module_forward.1} parent=0 // loop_body
    %s20 = ssub.s32 %s15, 1
    %s21 = ssub.s32 %s15, 2
    %s22 = sadd.s32 %s15, 1
    %s23 = ssub.s32 %s15, %s22
    %p24 = scmp.eq.s32.totalorder %s23, 0
    %s26 = sadd.s32 %s25, 1
    %s27 = scalar_select %p24, %s25, %s26
    %p30 = pneg %p24
    %p31 = scmp.eq.s32.totalorder %s15, 1
    %p32 = por %p30, %p31
    %p33 = scmp.ne.s32.totalorder %s25, %s28
    %p34 = scmp.eq.s32.totalorder %s15, 0
    %p35 = por %p33, %p34
    %p36 = scmp.ne.s32.totalorder %s25, %s28
    %p37 = scmp.eq.s32.totalorder %s20, 1
    %p38 = por %p36, %p37
    %p39 = scmp.ne.s32.totalorder %s28, %s29
    %p40 = scmp.eq.s32.totalorder %s20, 0
    %p41 = por %p39, %p40
    %p42 = scmp.ne.s32.totalorder %s28, %s29
    %p43 = scmp.eq.s32.totalorder %s21, 1
    %p44 = por %p42, %p43
    %p46 = scmp.ne.s32.totalorder %s29, %s45
    %p47 = scmp.eq.s32.totalorder %s21, 0
    %p48 = por %p46, %p47
    %s49 = ssub.s32 %s15, %s22
    %p50 = scmp.eq.s32.totalorder %s49, 0
    %s52 = sadd.s32 %s51, 1
    %s53 = scalar_select %p50, %s51, %s52
    %p56 = pneg %p50
    %p57 = scmp.eq.s32.totalorder %s15, 1
    %p58 = por %p56, %p57
    %p59 = scmp.ne.s32.totalorder %s51, %s54
    %p60 = scmp.eq.s32.totalorder %s15, 0
    %p61 = por %p59, %p60
    %p62 = scmp.ne.s32.totalorder %s51, %s54
    %p63 = scmp.eq.s32.totalorder %s20, 1
    %p64 = por %p62, %p63
    %p65 = scmp.ne.s32.totalorder %s54, %s55
    %p66 = scmp.eq.s32.totalorder %s20, 0
    %p67 = por %p65, %p66
    %p68 = scmp.ne.s32.totalorder %s54, %s55
    %p69 = scmp.eq.s32.totalorder %s21, 1
    %p70 = por %p68, %p69
    %p72 = scmp.ne.s32.totalorder %s55, %s71
    %p73 = scmp.eq.s32.totalorder %s21, 0
    %p74 = por %p72, %p73
    %s76 = sadd.s32 %s75, 1
    %p79 = scmp.eq.s32.totalorder %s15, 1
    %p80 = scmp.ne.s32.totalorder %s75, %s77
    %p81 = scmp.eq.s32.totalorder %s15, 0
    %p82 = por %p80, %p81
    %p83 = scmp.ne.s32.totalorder %s75, %s77
    %p84 = scmp.eq.s32.totalorder %s20, 1
    %p85 = por %p83, %p84
    %p86 = scmp.ne.s32.totalorder %s77, %s78
    %p87 = scmp.eq.s32.totalorder %s20, 0
    %p88 = por %p86, %p87
    %p89 = scmp.ne.s32.totalorder %s77, %s78
    %p90 = scmp.eq.s32.totalorder %s21, 1
    %p91 = por %p89, %p90
    %p93 = scmp.ne.s32.totalorder %s78, %s92
    %p94 = scmp.eq.s32.totalorder %s21, 0
    %p95 = por %p93, %p94
    %s97 = sadd.s32 %s96, 1
    %p100 = scmp.eq.s32.totalorder %s15, 1
    %p101 = scmp.ne.s32.totalorder %s96, %s98
    %p102 = scmp.eq.s32.totalorder %s15, 0
    %p103 = por %p101, %p102
    %p104 = scmp.ne.s32.totalorder %s96, %s98
    %p105 = scmp.eq.s32.totalorder %s20, 1
    %p106 = por %p104, %p105
    %p107 = scmp.ne.s32.totalorder %s98, %s99
    %p108 = scmp.eq.s32.totalorder %s20, 0
    %p109 = por %p107, %p108
    %p110 = scmp.ne.s32.totalorder %s98, %s99
    %p111 = scmp.eq.s32.totalorder %s21, 1
    %p112 = por %p110, %p111
    %p114 = scmp.ne.s32.totalorder %s99, %s113
    %p115 = scmp.eq.s32.totalorder %s21, 0
    %p116 = por %p114, %p115
    %s118 = sadd.s32 %s117, 1
    %p121 = scmp.eq.s32.totalorder %s15, 1
    %p122 = scmp.ne.s32.totalorder %s117, %s119
    %p123 = scmp.eq.s32.totalorder %s15, 0
    %p124 = por %p122, %p123
    %p125 = scmp.ne.s32.totalorder %s117, %s119
    %p126 = scmp.eq.s32.totalorder %s20, 1
    %p127 = por %p125, %p126
    %p128 = scmp.ne.s32.totalorder %s119, %s120
    %p129 = scmp.eq.s32.totalorder %s20, 0
    %p130 = por %p128, %p129
    %p131 = scmp.ne.s32.totalorder %s119, %s120
    %p132 = scmp.eq.s32.totalorder %s21, 1
    %p133 = por %p131, %p132
    %p135 = scmp.ne.s32.totalorder %s120, %s134
    %p136 = scmp.eq.s32.totalorder %s21, 0
    %p137 = por %p135, %p136
    %s139 = sadd.s32 %s138, 1
    %p142 = scmp.eq.s32.totalorder %s15, 1
    %p143 = scmp.ne.s32.totalorder %s138, %s140
    %p144 = scmp.eq.s32.totalorder %s15, 0
    %p145 = por %p143, %p144
    %p146 = scmp.ne.s32.totalorder %s138, %s140
    %p147 = scmp.eq.s32.totalorder %s20, 1
    %p148 = por %p146, %p147
    %p149 = scmp.ne.s32.totalorder %s140, %s141
    %p150 = scmp.eq.s32.totalorder %s20, 0
    %p151 = por %p149, %p150
    %p152 = scmp.ne.s32.totalorder %s140, %s141
    %p153 = scmp.eq.s32.totalorder %s21, 1
    %p154 = por %p152, %p153
    %p156 = scmp.ne.s32.totalorder %s141, %s155
    %p157 = scmp.eq.s32.totalorder %s21, 0
    %p158 = por %p156, %p157
    %s160 = sadd.s32 %s159, 1
    %p163 = scmp.eq.s32.totalorder %s15, 1
    %p164 = scmp.ne.s32.totalorder %s159, %s161
    %p165 = scmp.eq.s32.totalorder %s15, 0
    %p166 = por %p164, %p165
    %p167 = scmp.ne.s32.totalorder %s159, %s161
    %p168 = scmp.eq.s32.totalorder %s20, 1
    %p169 = por %p167, %p168
    %p170 = scmp.ne.s32.totalorder %s161, %s162
    %p171 = scmp.eq.s32.totalorder %s20, 0
    %p172 = por %p170, %p171
    %p173 = scmp.ne.s32.totalorder %s161, %s162
    %p174 = scmp.eq.s32.totalorder %s21, 1
    %p175 = por %p173, %p174
    %p177 = scmp.ne.s32.totalorder %s162, %s176
    %p178 = scmp.eq.s32.totalorder %s21, 0
    %p179 = por %p177, %p178
    %s180 = ssub.s32 %s15, %s22
    %p181 = scmp.eq.s32.totalorder %s180, 0
    %s183 = sadd.s32 %s182, 1
    %s184 = scalar_select %p181, %s182, %s183
    %p187 = pneg %p181
    %p188 = scmp.eq.s32.totalorder %s15, 1
    %p189 = por %p187, %p188
    %p190 = scmp.ne.s32.totalorder %s182, %s185
    %p191 = scmp.eq.s32.totalorder %s15, 0
    %p192 = por %p190, %p191
    %p193 = scmp.ne.s32.totalorder %s182, %s185
    %p194 = scmp.eq.s32.totalorder %s20, 1
    %p195 = por %p193, %p194
    %p196 = scmp.ne.s32.totalorder %s185, %s186
    %p197 = scmp.eq.s32.totalorder %s20, 0
    %p198 = por %p196, %p197
    %p199 = scmp.ne.s32.totalorder %s185, %s186
    %p200 = scmp.eq.s32.totalorder %s21, 1
    %p201 = por %p199, %p200
    %p203 = scmp.ne.s32.totalorder %s186, %s202
    %p204 = scmp.eq.s32.totalorder %s21, 0
    %p205 = por %p203, %p204
    %s206 = ssub.s32 %s15, %s22
    %p207 = scmp.eq.s32.totalorder %s206, 0
    %s209 = sadd.s32 %s208, 1
    %s210 = scalar_select %p207, %s208, %s209
    %p213 = pneg %p207
    %p214 = scmp.eq.s32.totalorder %s15, 1
    %p215 = por %p213, %p214
    %p216 = scmp.ne.s32.totalorder %s208, %s211
    %p217 = scmp.eq.s32.totalorder %s15, 0
    %p218 = por %p216, %p217
    %p219 = scmp.ne.s32.totalorder %s208, %s211
    %p220 = scmp.eq.s32.totalorder %s20, 1
    %p221 = por %p219, %p220
    %p222 = scmp.ne.s32.totalorder %s211, %s212
    %p223 = scmp.eq.s32.totalorder %s20, 0
    %p224 = por %p222, %p223
    %p225 = scmp.ne.s32.totalorder %s211, %s212
    %p226 = scmp.eq.s32.totalorder %s21, 1
    %p227 = por %p225, %p226
    %p229 = scmp.ne.s32.totalorder %s212, %s228
    %p230 = scmp.eq.s32.totalorder %s21, 0
    %p231 = por %p229, %p230
    %p232 = scmp.le.s32.totalorder 1, %s15
    %p233 = scmp.lt.s32.totalorder %s15, 3
    %p234 = pnand %p232, %p233
    %p235 = pneg %p234
    // Predicated region
    $region9: #{fuse_module_forward.1} parent=5 // pred_check
      _
    $region10: #{fuse_module_forward.1} parent=5 // pred_check_branch
      %237 = sbr.rel (%p234) target = $region12
    $region11: #{fuse_module_forward.1} parent=5 // pred_region
      %s238 = ssub.s32 %s15, 1
      // Predicated region
      $region13: #{fuse_module_forward.1} parent=11 // pred_check
        %p239 = pneg %p88
      $region14: #{fuse_module_forward.1} parent=11 // pred_check_branch
        %241 = sbr.rel (%p239) target = $region16
      $region15: #{fuse_module_forward.1} parent=11 // pred_region
        _
      $region16: #{fuse_module_forward.1} parent=11 // pred_fallthru
        _
      // Predicated region
      $region17: #{fuse_module_forward.1} parent=11 // pred_check
        %p242 = pneg %p109
      $region18: #{fuse_module_forward.1} parent=11 // pred_check_branch
        %244 = sbr.rel (%p242) target = $region20
      $region19: #{fuse_module_forward.1} parent=11 // pred_region
        _
      $region20: #{fuse_module_forward.1} parent=11 // pred_fallthru
        _
      // Predicated region
      $region21: #{fuse_module_forward.1} parent=11 // pred_check
        %p245 = pneg %p130
      $region22: #{fuse_module_forward.1} parent=11 // pred_check_branch
        %247 = sbr.rel (%p245) target = $region24
      $region23: #{fuse_module_forward.1} parent=11 // pred_region
        _
      $region24: #{fuse_module_forward.1} parent=11 // pred_fallthru
        _
      // Predicated region
      $region25: #{fuse_module_forward.1} parent=11 // pred_check
        %p248 = pneg %p151
      $region26: #{fuse_module_forward.1} parent=11 // pred_check_branch
        %250 = sbr.rel (%p248) target = $region28
      $region27: #{fuse_module_forward.1} parent=11 // pred_region
        _
      $region28: #{fuse_module_forward.1} parent=11 // pred_fallthru
        _
      // Predicated region
      $region29: #{fuse_module_forward.1} parent=11 // pred_check
        %p251 = pneg %p172
      $region30: #{fuse_module_forward.1} parent=11 // pred_check_branch
        %253 = sbr.rel (%p251) target = $region32
      $region31: #{fuse_module_forward.1} parent=11 // pred_region
        _
      $region32: #{fuse_module_forward.1} parent=11 // pred_fallthru
        _
    $region12: #{fuse_module_forward.1} parent=5 // pred_fallthru
      _
    %p254 = scmp.lt.s32.totalorder %s15, 2
    // Predicated region
    $region33: #{fuse_module_forward.1} parent=5 // pred_check
      %p255 = pneg %p254
    $region34: #{fuse_module_forward.1} parent=5 // pred_check_branch
      %257 = sbr.rel (%p255) target = $region36
    $region35: #{fuse_module_forward.1} parent=5 // pred_region
      // Predicated region
      $region37: #{fuse_module_forward.1} parent=35 // pred_check
        %p258 = pneg %p35
      $region38: #{fuse_module_forward.1} parent=35 // pred_check_branch
        %260 = sbr.rel (%p258) target = $region40
      $region39: #{fuse_module_forward.1} parent=35 // pred_region
        %p261 = scmp.lt.s32.totalorder %s15, 1
        %s262 = scalar_select %p261, %s15, 1
        %s263 = smul.addr %s262, 2
        %s264 = smul.addr %s263, 8
        %s265 = scalar_lea.vmem %s0, %s264
      $region40: #{fuse_module_forward.1} parent=35 // pred_fallthru
        _
      // Predicated region
      $region41: #{fuse_module_forward.1} parent=35 // pred_check
        %p266 = pneg %p61
      $region42: #{fuse_module_forward.1} parent=35 // pred_check_branch
        %268 = sbr.rel (%p266) target = $region44
      $region43: #{fuse_module_forward.1} parent=35 // pred_region
        %p269 = scmp.lt.s32.totalorder %s15, 1
        %s270 = scalar_select %p269, %s15, 1
        %s271 = smul.addr %s270, 2
        %s272 = smul.addr %s271, 8
        %s273 = scalar_lea.vmem %s1, %s272
      $region44: #{fuse_module_forward.1} parent=35 // pred_fallthru
        _
    $region36: #{fuse_module_forward.1} parent=5 // pred_fallthru
      _
    %p274 = scmp.le.s32.totalorder 1, %s15
    %p275 = scmp.lt.s32.totalorder %s15, 3
    %p276 = pnand %p274, %p275
    %p277 = pneg %p276
    // Predicated region
    $region45: #{fuse_module_forward.1} parent=5 // pred_check
      _
    $region46: #{fuse_module_forward.1} parent=5 // pred_check_branch
      %279 = sbr.rel (%p276) target = $region48
    $region47: #{fuse_module_forward.1} parent=5 // pred_region
      %s280 = ssub.s32 %s15, 1
      %p281 = scmp.lt.s32.totalorder %s20, 1
      %s282 = scalar_select %p281, %s20, 1
      %s283 = smul.addr %s282, 2
      %s284 = smul.addr %s283, 8
      %s285 = scalar_lea.vmem %s0, %s284
      %p286 = pneg %p41
      %p287 = pneg %p38
      %p288 = scmp.lt.s32.totalorder %s20, 1
      %s289 = scalar_select %p288, %s20, 1
      %s290 = smul.addr %s289, 2
      %s291 = smul.addr %s290, 8
      %s292 = scalar_lea.vmem %s1, %s291
      %p293 = pneg %p67
      %p294 = pneg %p64
      %p295 = pneg %p88
      %p296 = pneg %p85
      %p297 = pneg %p109
      %p298 = pneg %p106
      %p299 = pneg %p130
      %p300 = pneg %p127
      %p301 = pneg %p151
      %p302 = pneg %p148
      %p303 = pneg %p172
      %p304 = pneg %p169
      %p305 = pneg %p198
      %p306 = pneg %p195
      %p307 = scmp.lt.s32.totalorder %s20, 1
      %s308 = scalar_select %p307, %s20, 1
      %s309 = smul.addr %s308, 2
      %s310 = smul.addr %s309, 8
      %s311 = scalar_lea.vmem %s7, %s310
      %p312 = pneg %p224
      %p313 = pneg %p221
      %p314 = scmp.lt.s32.totalorder %s20, 1
      %s315 = scalar_select %p314, %s20, 1
      %s316 = smul.addr %s315, 2
      %s317 = smul.addr %s316, 8
      %s318 = scalar_lea.vmem %s8, %s317
      %p319 = scmp.lt.s32.totalorder %s20, 1
      %s320 = scalar_select %p319, %s20, 1
      %s321 = smul.addr %s320, 2
      %s322 = smul.addr %s321, 8
      %s323 = scalar_lea.vmem %s0, %s322
      %p324 = scmp.lt.s32.totalorder %s20, 1
      %s325 = scalar_select %p324, %s20, 1
      %s326 = smul.addr %s325, 2
      %s327 = smul.addr %s326, 8
      %s328 = scalar_lea.vmem %s1, %s327
      %p329 = scmp.lt.s32.totalorder %s20, 1
      %s330 = scalar_select %p329, %s20, 1
      %s331 = smul.addr %s330, 2
      %s332 = smul.addr %s331, 8
      %s333 = scalar_lea.vmem %s7, %s332
      %p334 = scmp.lt.s32.totalorder %s20, 1
      %s335 = scalar_select %p334, %s20, 1
      %s336 = smul.addr %s335, 2
      %s337 = smul.addr %s336, 8
      %s338 = scalar_lea.vmem %s8, %s337
      %v340 = vld [vmem:[%s323] sm:$0xff]
      %v341 = vld [vmem:[%s323 + $0x8] sm:$0xff]
      %v342 = vld [vmem:[%s328] sm:$0xff]
      %v343 = vld [vmem:[%s328 + $0x8] sm:$0xff]
      %v344 = vlaneseq
      %v345 = vand.u32 %v344, 127
      %v346 = vadd.s32 %v345, 128
      %v347 = vand.u32 %v345, 15
      %v348 = vand.u32 %v346, 15
      %vm349 = vcmp.ge.s32.totalorder %v347, 1
      %vm350 = vcmp.ge.s32.totalorder %v348, 1
      %v351 = vsel %vm349, 1, 0
      %v352 = vsel %vm350, 1, 0
      %v353 = vcvt.s32.f32 %v351
      %v354 = vcvt.s32.f32 %v352
      %vm355 = vcmp.le.s32.totalorder %v347, 14
      %vm356 = vcmp.le.s32.totalorder %v348, 14
      %v357 = vsel %vm355, 1, 0
      %v358 = vsel %vm356, 1, 0
      %v359 = vcvt.s32.f32 %v357
      %v360 = vcvt.s32.f32 %v358
      %363 = vrot.lane.b32.xlu0 %v340, 17
      %v364 = vpop.permute.xlu0 %363
      %365 = vrot.lane.b32.xlu0 %v341, 17
      %v366 = vpop.permute.xlu0 %365
      %vm367 = vcmask 138240
      %v368 = vsel %vm367, %v364, %v366
      %v371 = vsel %vm367, 0.0, %v364
      %v372 = vmul.f32 %v371, %v353
      %v373 = vmul.f32 %v368, %v354
      %374 = vrot.lane.b32.xlu0 %v340, 16
      %v375 = vpop.permute.xlu0 %374
      %376 = vrot.lane.b32.xlu0 %v341, 16
      %v377 = vpop.permute.xlu0 %376
      %vm378 = vcmask 130048
      %v379 = vsel %vm378, %v375, %v377
      %v382 = vsel %vm378, 0.0, %v375
      %383 = vrot.lane.b32.xlu0 %v340, 15
      %v384 = vpop.permute.xlu0 %383
      %385 = vrot.lane.b32.xlu0 %v341, 15
      %v386 = vpop.permute.xlu0 %385
      %vm387 = vcmask 121856
      %v388 = vsel %vm387, %v384, %v386
      %v391 = vsel %vm387, 0.0, %v384
      %v392 = vmul.f32 %v391, %v359
      %v393 = vmul.f32 %v388, %v360
      %394 = vrot.lane.b32.xlu0 %v340, 1
      %v395 = vpop.permute.xlu0 %394
      %396 = vrot.lane.b32.xlu0 %v341, 1
      %v397 = vpop.permute.xlu0 %396
      %vm398 = vcmask 7168
      %v399 = vsel %vm398, %v395, %v397
      %v402 = vsel %vm398, 0.0, %v395
      %v403 = vmul.f32 %v402, %v353
      %v404 = vmul.f32 %v399, %v354
      %405 = vrot.lane.b32.xlu0 %v340, 127
      %v406 = vpop.permute.xlu0 %405
      %407 = vrot.lane.b32.xlu0 %v341, 127
      %v408 = vpop.permute.xlu0 %407
      %vm409 = vcmask 1039360
      %v410 = vsel %vm409, %v406, %v408
      %v413 = vsel %vm409, %v408, 0.0
      %v414 = vmul.f32 %v410, %v359
      %v415 = vmul.f32 %v413, %v360
      %416 = vrot.lane.b32.xlu0 %v340, 113
      %v417 = vpop.permute.xlu0 %416
      %418 = vrot.lane.b32.xlu0 %v341, 113
      %v419 = vpop.permute.xlu0 %418
      %vm420 = vcmask 924672
      %v421 = vsel %vm420, %v417, %v419
      %v424 = vsel %vm420, %v419, 0.0
      %v425 = vmul.f32 %v421, %v353
      %v426 = vmul.f32 %v424, %v354
      %427 = vrot.lane.b32.xlu0 %v340, 112
      %v428 = vpop.permute.xlu0 %427
      %429 = vrot.lane.b32.xlu0 %v341, 112
      %v430 = vpop.permute.xlu0 %429
      %vm431 = vcmask 916480
      %v432 = vsel %vm431, %v428, %v430
      %v435 = vsel %vm431, %v430, 0.0
      %436 = vrot.lane.b32.xlu0 %v340, 111
      %v437 = vpop.permute.xlu0 %436
      %438 = vrot.lane.b32.xlu0 %v341, 111
      %v439 = vpop.permute.xlu0 %438
      %vm440 = vcmask 908288
      %v441 = vsel %vm440, %v437, %v439
      %v444 = vsel %vm440, %v439, 0.0
      %v445 = vmul.f32 %v441, %v359
      %v446 = vmul.f32 %v444, %v360
      %449 = vrot.lane.b32.xlu0 %v342, 17
      %v450 = vpop.permute.xlu0 %449
      %451 = vrot.lane.b32.xlu0 %v343, 17
      %v452 = vpop.permute.xlu0 %451
      %v453 = vsel %vm367, %v450, %v452
      %v456 = vsel %vm367, 0.0, %v450
      %v457 = vmul.f32 %v456, %v353
      %v458 = vmul.f32 %v453, %v354
      %459 = vrot.lane.b32.xlu0 %v342, 16
      %v460 = vpop.permute.xlu0 %459
      %461 = vrot.lane.b32.xlu0 %v343, 16
      %v462 = vpop.permute.xlu0 %461
      %v463 = vsel %vm378, %v460, %v462
      %v466 = vsel %vm378, 0.0, %v460
      %467 = vrot.lane.b32.xlu0 %v342, 15
      %v468 = vpop.permute.xlu0 %467
      %469 = vrot.lane.b32.xlu0 %v343, 15
      %v470 = vpop.permute.xlu0 %469
      %v471 = vsel %vm387, %v468, %v470
      %v474 = vsel %vm387, 0.0, %v468
      %v475 = vmul.f32 %v474, %v359
      %v476 = vmul.f32 %v471, %v360
      %477 = vrot.lane.b32.xlu0 %v342, 1
      %v478 = vpop.permute.xlu0 %477
      %479 = vrot.lane.b32.xlu0 %v343, 1
      %v480 = vpop.permute.xlu0 %479
      %v481 = vsel %vm398, %v478, %v480
      %v484 = vsel %vm398, 0.0, %v478
      %v485 = vmul.f32 %v484, %v353
      %v486 = vmul.f32 %v481, %v354
      %487 = vrot.lane.b32.xlu0 %v342, 127
      %v488 = vpop.permute.xlu0 %487
      %489 = vrot.lane.b32.xlu0 %v343, 127
      %v490 = vpop.permute.xlu0 %489
      %v491 = vsel %vm409, %v488, %v490
      %v494 = vsel %vm409, %v490, 0.0
      %v495 = vmul.f32 %v491, %v359
      %v496 = vmul.f32 %v494, %v360
      %497 = vrot.lane.b32.xlu0 %v342, 113
      %v498 = vpop.permute.xlu0 %497
      %499 = vrot.lane.b32.xlu0 %v343, 113
      %v500 = vpop.permute.xlu0 %499
      %v501 = vsel %vm420, %v498, %v500
      %v504 = vsel %vm420, %v500, 0.0
      %v505 = vmul.f32 %v501, %v353
      %v506 = vmul.f32 %v504, %v354
      %507 = vrot.lane.b32.xlu0 %v342, 112
      %v508 = vpop.permute.xlu0 %507
      %509 = vrot.lane.b32.xlu0 %v343, 112
      %v510 = vpop.permute.xlu0 %509
      %v511 = vsel %vm431, %v508, %v510
      %v514 = vsel %vm431, %v510, 0.0
      %515 = vrot.lane.b32.xlu0 %v342, 111
      %v516 = vpop.permute.xlu0 %515
      %517 = vrot.lane.b32.xlu0 %v343, 111
      %v518 = vpop.permute.xlu0 %517
      %v519 = vsel %vm440, %v516, %v518
      %v522 = vsel %vm440, %v518, 0.0
      %v523 = vmul.f32 %v519, %v359
      %v524 = vmul.f32 %v522, %v360
      %v525 = vpack.c.bf16 %v382, %v372
      %v526 = vpack.c.bf16 %v379, %v373
      %v527 = vpack.c.bf16 %v403, %v392
      %v528 = vpack.c.bf16 %v404, %v393
      %v529 = vpack.c.bf16 %v414, %v340
      %v530 = vpack.c.bf16 %v415, %v341
      %v531 = vpack.c.bf16 %v432, %v425
      %v532 = vpack.c.bf16 %v435, %v426
      %v533 = vpack.c.bf16 %v457, %v445
      %v534 = vpack.c.bf16 %v458, %v446
      %v535 = vpack.c.bf16 %v475, %v466
      %v536 = vpack.c.bf16 %v476, %v463
      %v537 = vpack.c.bf16 %v342, %v485
      %v538 = vpack.c.bf16 %v343, %v486
      %v539 = vpack.c.bf16 %v505, %v495
      %v540 = vpack.c.bf16 %v506, %v496
      %v541 = vpack.c.bf16 %v523, %v511
      %v542 = vpack.c.bf16 %v524, %v514
      %v543 = vld [vmem:[%s2] sm:$0xff]
      %v544 = vld [vmem:[%s2 + $0x8] sm:$0xff]
      %v545 = vld [vmem:[%s3] sm:$0xff]
      %v546 = vld [vmem:[%s3 + $0x8] sm:$0xff]
      %548 = vset.pattern.permute.xlu0 0
      %549 = vperm.xlu0 %548, %v545
      %v550 = vpop.permute.xlu0 %549
      %553 = vset.pattern.permute.xlu0 0
      %554 = vperm.xlu0 %553, %v546
      %v555 = vpop.permute.xlu0 %554
      %v559 = vunpack.c.l.b16 %v543
      %v560 = vunpack.c.h.b16 %v543
      %v561 = vunpack.c.l.b16 %v544
      %v562 = vunpack.c.h.b16 %v544
      %v563 = vpack.c.b16 %v561, %v559
      %v564 = vpack.c.b16 %v562, %v560
      %v567 = vsel %vm378, %v564, 0
      %569 = vmatprep.subr.bf16.mxu0 %v540
      %570 = vmatpush1.bf16.msra.mxu0 %v539
      %571 = vmatprep.subr.bf16.mxu0 %v538
      %572 = vmatpush1.bf16.msra.mxu0 %v537
      %573 = vmatprep.subr.bf16.mxu0 %v536
      %574 = vmatpush1.bf16.msra.mxu0 %v535
      %575 = vmatprep.subr.bf16.mxu0 %v534
      %576 = vmatpush1.bf16.msra.mxu0 %v533
      %577 = vmatprep.subr.bf16.mxu0 %v532
      %578 = vmatpush1.bf16.msra.mxu0 %v531
      %579 = vmatprep.subr.bf16.mxu0 %v530
      %580 = vmatpush1.bf16.msra.mxu0 %v529
      %581 = vmatprep.subr.bf16.mxu0 %v528
      %582 = vmatpush1.bf16.msra.mxu0 %v527
      %583 = vmatprep.subr.bf16.mxu0 %v526
      %584 = vmatpush1.bf16.msra.mxu0 %v525
      %585 = vmatprep.subr.bf16.mxu0 0
      %586 = vmatpush2.bf16.msra.mxu0 0
      %587 = vmatprep.subr.bf16.mxu0 0
      %588 = vmatpush2.bf16.msra.mxu0 0
      %589 = vmatprep.subr.bf16.mxu0 0
      %590 = vmatpush2.bf16.msra.mxu0 0
      %591 = vmatprep.subr.bf16.mxu0 0
      %592 = vmatpush2.bf16.msra.mxu0 0
      %593 = vmatprep.subr.bf16.mxu0 0
      %594 = vmatpush2.bf16.msra.mxu0 0
      %595 = vmatprep.subr.bf16.mxu0 0
      %596 = vmatpush2.bf16.msra.mxu0 0
      %597 = vmatprep.subr.bf16.mxu0 0
      %598 = vmatpush2.bf16.msra.mxu0 0
      %599 = vmatprep.subr.bf16.mxu0 %v542
      %600 = vmatpush2.bf16.msra.mxu0 %v541
      %601 = vmatprep.mubr.bf16.mxu0 %v567
      %602 = vmatmul.mubr.bf16.gmra.mxu0 %v563
      %v603 = vpop.f32.mrf.mxu0
      %v604 = vadd.f32 %v550, %v603
      %v605 = vpop.f32.mrf.mxu0
      %v606 = vadd.f32 %v550, %v605
      %v607 = vpop.f32.mrf.mxu0
      %v608 = vadd.f32 %v555, %v607
      %v609 = vpop.f32.mrf.mxu0
      %v610 = vadd.f32 %v555, %v609
      %611 = vdwg.mxu0
      %v612 = vmul.f32 %v604, %v608
      %v613 = vmul.f32 %v606, %v610
      %v614 = vxor.u32 %v612, 2147483648
      %v615 = vxor.u32 %v613, 2147483648
      %v616 = vmul.f32 %v614, 1.442695
      %v617 = vpow.pop %v616
      %v618 = vmul.f32 %v615, 1.442695
      %v619 = vpow.pop %v618
      %v620 = vadd.f32 %v617, 1.0
      %v621 = vadd.f32 %v619, 1.0
      %v622 = vrcp.pop %v620
      %v623 = vmul.f32 1.0, %v622
      %v624 = vrcp.pop %v621
      %v625 = vmul.f32 1.0, %v624
      %v626 = vmul.f32 %v340, %v623
      %v627 = vmul.f32 %v341, %v625
      %v628 = vmul.f32 %v342, %v623
      %v629 = vmul.f32 %v343, %v625
      %632 = vrot.lane.b32.xlu0 %v626, 17
      %v633 = vpop.permute.xlu0 %632
      %634 = vrot.lane.b32.xlu0 %v627, 17
      %v635 = vpop.permute.xlu0 %634
      %v636 = vsel %vm367, %v633, %v635
      %v639 = vsel %vm367, 0.0, %v633
      %v640 = vmul.f32 %v639, %v353
      %v641 = vmul.f32 %v636, %v354
      %642 = vrot.lane.b32.xlu0 %v626, 16
      %v643 = vpop.permute.xlu0 %642
      %644 = vrot.lane.b32.xlu0 %v627, 16
      %v645 = vpop.permute.xlu0 %644
      %v646 = vsel %vm378, %v643, %v645
      %v649 = vsel %vm378, 0.0, %v643
      %650 = vrot.lane.b32.xlu0 %v626, 15
      %v651 = vpop.permute.xlu0 %650
      %652 = vrot.lane.b32.xlu0 %v627, 15
      %v653 = vpop.permute.xlu0 %652
      %v654 = vsel %vm387, %v651, %v653
      %v657 = vsel %vm387, 0.0, %v651
      %v658 = vmul.f32 %v657, %v359
      %v659 = vmul.f32 %v654, %v360
      %660 = vrot.lane.b32.xlu0 %v626, 1
      %v661 = vpop.permute.xlu0 %660
      %662 = vrot.lane.b32.xlu0 %v627, 1
      %v663 = vpop.permute.xlu0 %662
      %v664 = vsel %vm398, %v661, %v663
      %v667 = vsel %vm398, 0.0, %v661
      %v668 = vmul.f32 %v667, %v353
      %v669 = vmul.f32 %v664, %v354
      %670 = vrot.lane.b32.xlu0 %v626, 127
      %v671 = vpop.permute.xlu0 %670
      %672 = vrot.lane.b32.xlu0 %v627, 127
      %v673 = vpop.permute.xlu0 %672
      %v674 = vsel %vm409, %v671, %v673
      %v677 = vsel %vm409, %v673, 0.0
      %v678 = vmul.f32 %v674, %v359
      %v679 = vmul.f32 %v677, %v360
      %680 = vrot.lane.b32.xlu0 %v626, 113
      %v681 = vpop.permute.xlu0 %680
      %682 = vrot.lane.b32.xlu0 %v627, 113
      %v683 = vpop.permute.xlu0 %682
      %v684 = vsel %vm420, %v681, %v683
      %v687 = vsel %vm420, %v683, 0.0
      %v688 = vmul.f32 %v684, %v353
      %v689 = vmul.f32 %v687, %v354
      %690 = vrot.lane.b32.xlu0 %v626, 112
      %v691 = vpop.permute.xlu0 %690
      %692 = vrot.lane.b32.xlu0 %v627, 112
      %v693 = vpop.permute.xlu0 %692
      %v694 = vsel %vm431, %v691, %v693
      %v697 = vsel %vm431, %v693, 0.0
      %698 = vrot.lane.b32.xlu0 %v626, 111
      %v699 = vpop.permute.xlu0 %698
      %700 = vrot.lane.b32.xlu0 %v627, 111
      %v701 = vpop.permute.xlu0 %700
      %v702 = vsel %vm440, %v699, %v701
      %v705 = vsel %vm440, %v701, 0.0
      %v706 = vmul.f32 %v702, %v359
      %v707 = vmul.f32 %v705, %v360
      %710 = vrot.lane.b32.xlu0 %v628, 17
      %v711 = vpop.permute.xlu0 %710
      %712 = vrot.lane.b32.xlu0 %v629, 17
      %v713 = vpop.permute.xlu0 %712
      %v714 = vsel %vm367, %v711, %v713
      %v717 = vsel %vm367, 0.0, %v711
      %v718 = vmul.f32 %v717, %v353
      %v719 = vmul.f32 %v714, %v354
      %720 = vrot.lane.b32.xlu0 %v628, 16
      %v721 = vpop.permute.xlu0 %720
      %722 = vrot.lane.b32.xlu0 %v629, 16
      %v723 = vpop.permute.xlu0 %722
      %v724 = vsel %vm378, %v721, %v723
      %v727 = vsel %vm378, 0.0, %v721
      %728 = vrot.lane.b32.xlu0 %v628, 15
      %v729 = vpop.permute.xlu0 %728
      %730 = vrot.lane.b32.xlu0 %v629, 15
      %v731 = vpop.permute.xlu0 %730
      %v732 = vsel %vm387, %v729, %v731
      %v735 = vsel %vm387, 0.0, %v729
      %v736 = vmul.f32 %v735, %v359
      %v737 = vmul.f32 %v732, %v360
      %738 = vrot.lane.b32.xlu0 %v628, 1
      %v739 = vpop.permute.xlu0 %738
      %740 = vrot.lane.b32.xlu0 %v629, 1
      %v741 = vpop.permute.xlu0 %740
      %v742 = vsel %vm398, %v739, %v741
      %v745 = vsel %vm398, 0.0, %v739
      %v746 = vmul.f32 %v745, %v353
      %v747 = vmul.f32 %v742, %v354
      %748 = vrot.lane.b32.xlu0 %v628, 127
      %v749 = vpop.permute.xlu0 %748
      %750 = vrot.lane.b32.xlu0 %v629, 127
      %v751 = vpop.permute.xlu0 %750
      %v752 = vsel %vm409, %v749, %v751
      %v755 = vsel %vm409, %v751, 0.0
      %v756 = vmul.f32 %v752, %v359
      %v757 = vmul.f32 %v755, %v360
      %758 = vrot.lane.b32.xlu0 %v628, 113
      %v759 = vpop.permute.xlu0 %758
      %760 = vrot.lane.b32.xlu0 %v629, 113
      %v761 = vpop.permute.xlu0 %760
      %v762 = vsel %vm420, %v759, %v761
      %v765 = vsel %vm420, %v761, 0.0
      %v766 = vmul.f32 %v762, %v353
      %v767 = vmul.f32 %v765, %v354
      %768 = vrot.lane.b32.xlu0 %v628, 112
      %v769 = vpop.permute.xlu0 %768
      %770 = vrot.lane.b32.xlu0 %v629, 112
      %v771 = vpop.permute.xlu0 %770
      %v772 = vsel %vm431, %v769, %v771
      %v775 = vsel %vm431, %v771, 0.0
      %776 = vrot.lane.b32.xlu0 %v628, 111
      %v777 = vpop.permute.xlu0 %776
      %778 = vrot.lane.b32.xlu0 %v629, 111
      %v779 = vpop.permute.xlu0 %778
      %v780 = vsel %vm440, %v777, %v779
      %v783 = vsel %vm440, %v779, 0.0
      %v784 = vmul.f32 %v780, %v359
      %v785 = vmul.f32 %v783, %v360
      %v786 = vpack.c.bf16 %v649, %v640
      %v787 = vpack.c.bf16 %v646, %v641
      %v788 = vpack.c.bf16 %v668, %v658
      %v789 = vpack.c.bf16 %v669, %v659
      %v790 = vpack.c.bf16 %v678, %v626
      %v791 = vpack.c.bf16 %v679, %v627
      %v792 = vpack.c.bf16 %v694, %v688
      %v793 = vpack.c.bf16 %v697, %v689
      %v794 = vpack.c.bf16 %v718, %v706
      %v795 = vpack.c.bf16 %v719, %v707
      %v796 = vpack.c.bf16 %v736, %v727
      %v797 = vpack.c.bf16 %v737, %v724
      %v798 = vpack.c.bf16 %v628, %v746
      %v799 = vpack.c.bf16 %v629, %v747
      %v800 = vpack.c.bf16 %v766, %v756
      %v801 = vpack.c.bf16 %v767, %v757
      %v802 = vpack.c.bf16 %v784, %v772
      %v803 = vpack.c.bf16 %v785, %v775
      %v804 = vld [vmem:[%s4] sm:$0xf]
      %v805 = vld [vmem:[%s5] sm:$0xf]
      %v808 = vunpack.c.l.s4 1983009808
      %v809 = vunpack.c.0.s8 %v808
      %v810 = vlaneseq
      %v811 = vshrl.u32 %v810, 7
      %v812 = vsub.s32 %v809, %v811
      %v813 = vrot.slane %v805, %v812
      %v814 = vcombine.high %v813, %v813
      %v817 = vsel %vm378, %v814, 0
      %819 = vmatprep.subr.bf16.mxu0 %v801
      %820 = vmatpush1.bf16.msra.mxu0 %v800
      %821 = vmatprep.subr.bf16.mxu0 %v799
      %822 = vmatpush1.bf16.msra.mxu0 %v798
      %823 = vmatprep.subr.bf16.mxu0 %v797
      %824 = vmatpush1.bf16.msra.mxu0 %v796
      %825 = vmatprep.subr.bf16.mxu0 %v795
      %826 = vmatpush1.bf16.msra.mxu0 %v794
      %827 = vmatprep.subr.bf16.mxu0 %v793
      %828 = vmatpush1.bf16.msra.mxu0 %v792
      %829 = vmatprep.subr.bf16.mxu0 %v791
      %830 = vmatpush1.bf16.msra.mxu0 %v790
      %831 = vmatprep.subr.bf16.mxu0 %v789
      %832 = vmatpush1.bf16.msra.mxu0 %v788
      %833 = vmatprep.subr.bf16.mxu0 %v787
      %834 = vmatpush1.bf16.msra.mxu0 %v786
      %835 = vmatprep.subr.bf16.mxu0 0
      %836 = vmatpush2.bf16.msra.mxu0 0
      %837 = vmatprep.subr.bf16.mxu0 0
      %838 = vmatpush2.bf16.msra.mxu0 0
      %839 = vmatprep.subr.bf16.mxu0 0
      %840 = vmatpush2.bf16.msra.mxu0 0
      %841 = vmatprep.subr.bf16.mxu0 0
      %842 = vmatpush2.bf16.msra.mxu0 0
      %843 = vmatprep.subr.bf16.mxu0 0
      %844 = vmatpush2.bf16.msra.mxu0 0
      %845 = vmatprep.subr.bf16.mxu0 0
      %846 = vmatpush2.bf16.msra.mxu0 0
      %847 = vmatprep.subr.bf16.mxu0 0
      %848 = vmatpush2.bf16.msra.mxu0 0
      %849 = vmatprep.subr.bf16.mxu0 %v803
      %850 = vmatpush2.bf16.msra.mxu0 %v802
      %851 = vmatprep.mubr.bf16.mxu0 %v817
      %852 = vmatmul.mubr.bf16.gmra.mxu0 %v813
      %v853 = vpop.f32.mrf.mxu0
      %v854 = vadd.f32 0.0, %v853
      %v855 = vpop.f32.mrf.mxu0
      %v856 = vadd.f32 0.0, %v855
      %v857 = vpop.f32.mrf.mxu0
      %v858 = vpop.f32.mrf.mxu0
      %859 = vdwg.mxu0
      %v862 = vunpack.c.l.s4 1983009808
      %v863 = vunpack.c.0.s8 %v862
      %v864 = vlaneseq
      %v865 = vshrl.u32 %v864, 7
      %v866 = vsub.s32 %v863, %v865
      %v867 = vrot.slane %v804, %v866
      %v868 = vcombine.high %v867, %v867
      %v871 = vsel %vm378, %v868, 0
      %873 = vmatprep.subr.bf16.mxu0 %v540
      %874 = vmatpush1.bf16.msra.mxu0 %v539
      %875 = vmatprep.subr.bf16.mxu0 %v538
      %876 = vmatpush1.bf16.msra.mxu0 %v537
      %877 = vmatprep.subr.bf16.mxu0 %v536
      %878 = vmatpush1.bf16.msra.mxu0 %v535
      %879 = vmatprep.subr.bf16.mxu0 %v534
      %880 = vmatpush1.bf16.msra.mxu0 %v533
      %881 = vmatprep.subr.bf16.mxu0 %v532
      %882 = vmatpush1.bf16.msra.mxu0 %v531
      %883 = vmatprep.subr.bf16.mxu0 %v530
      %884 = vmatpush1.bf16.msra.mxu0 %v529
      %885 = vmatprep.subr.bf16.mxu0 %v528
      %886 = vmatpush1.bf16.msra.mxu0 %v527
      %887 = vmatprep.subr.bf16.mxu0 %v526
      %888 = vmatpush1.bf16.msra.mxu0 %v525
      %889 = vmatprep.subr.bf16.mxu0 0
      %890 = vmatpush2.bf16.msra.mxu0 0
      %891 = vmatprep.subr.bf16.mxu0 0
      %892 = vmatpush2.bf16.msra.mxu0 0
      %893 = vmatprep.subr.bf16.mxu0 0
      %894 = vmatpush2.bf16.msra.mxu0 0
      %895 = vmatprep.subr.bf16.mxu0 0
      %896 = vmatpush2.bf16.msra.mxu0 0
      %897 = vmatprep.subr.bf16.mxu0 0
      %898 = vmatpush2.bf16.msra.mxu0 0
      %899 = vmatprep.subr.bf16.mxu0 0
      %900 = vmatpush2.bf16.msra.mxu0 0
      %901 = vmatprep.subr.bf16.mxu0 0
      %902 = vmatpush2.bf16.msra.mxu0 0
      %903 = vmatprep.subr.bf16.mxu0 %v542
      %904 = vmatpush2.bf16.msra.mxu0 %v541
      %905 = vmatprep.mubr.bf16.mxu0 %v871
      %906 = vmatmul.mubr.bf16.gmra.mxu0 %v867
      %v907 = vpop.f32.mrf.mxu0
      %v908 = vadd.f32 %v854, %v907
      %v909 = vpop.f32.mrf.mxu0
      %v910 = vadd.f32 %v856, %v909
      %v911 = vpop.f32.mrf.mxu0
      %v912 = vpop.f32.mrf.mxu0
      %913 = vdwg.mxu0
      %v914 = vld [vmem:[%s6] sm:$0xf]
      %916 = vset.pattern.permute.xlu0 0
      %917 = vperm.xlu0 %916, %v914
      %v918 = vpop.permute.xlu0 %917
      %v920 = vadd.f32 %v908, %v918
      %v921 = vadd.f32 %v910, %v918
      %v922 = vlaneseq
      %v923 = vshrl.u32 %v922, 7
      %v924 = vsub.s32 0, %v923
      %v925 = vrot.slane %v920, %v924
      %v926 = vlaneseq
      %v927 = vshrl.u32 %v926, 7
      %v928 = vsub.s32 0, %v927
      %v929 = vrot.slane %v921, %v928
      %v930 = vmul.f32 %v340, %v925
      %v931 = vmul.f32 %v341, %v929
      %v932 = vlaneseq
      %v933 = vshrl.u32 %v932, 7
      %v934 = vsub.s32 1, %v933
      %v935 = vrot.slane %v920, %v934
      %v936 = vlaneseq
      %v937 = vshrl.u32 %v936, 7
      %v938 = vsub.s32 1, %v937
      %v939 = vrot.slane %v921, %v938
      %v940 = vmul.f32 %v626, %v935
      %v941 = vmul.f32 %v627, %v939
      %v942 = vadd.f32 %v930, %v940
      %v943 = vadd.f32 %v931, %v941
      %944 = vst [vmem:[%s333] sm:$0xff] %v942
      %945 = vst [vmem:[%s333 + $0x8] sm:$0xff] %v943
      %v946 = vlaneseq
      %v947 = vshrl.u32 %v946, 7
      %v948 = vsub.s32 2, %v947
      %v949 = vrot.slane %v920, %v948
      %v950 = vlaneseq
      %v951 = vshrl.u32 %v950, 7
      %v952 = vsub.s32 2, %v951
      %v953 = vrot.slane %v921, %v952
      %v954 = vmul.f32 %v342, %v949
      %v955 = vmul.f32 %v343, %v953
      %v956 = vlaneseq
      %v957 = vshrl.u32 %v956, 7
      %v958 = vsub.s32 3, %v957
      %v959 = vrot.slane %v920, %v958
      %v960 = vlaneseq
      %v961 = vshrl.u32 %v960, 7
      %v962 = vsub.s32 3, %v961
      %v963 = vrot.slane %v921, %v962
      %v964 = vmul.f32 %v628, %v959
      %v965 = vmul.f32 %v629, %v963
      %v966 = vadd.f32 %v954, %v964
      %v967 = vadd.f32 %v955, %v965
      %968 = vst [vmem:[%s338] sm:$0xff] %v966
      %969 = vst [vmem:[%s338 + $0x8] sm:$0xff] %v967
      %p970 = scmp.lt.s32.totalorder %s20, 1
      %s971 = scalar_select %p970, %s20, 1
      %s972 = smul.addr %s971, 2
      %s973 = smul.addr %s972, 8
      %s974 = scalar_lea.vmem %s7, %s973
      %p975 = scmp.lt.s32.totalorder %s20, 1
      %s976 = scalar_select %p975, %s20, 1
      %s977 = smul.addr %s976, 2
      %s978 = smul.addr %s977, 8
      %s979 = scalar_lea.vmem %s8, %s978
      // Predicated region
      $region49: #{fuse_module_forward.1} parent=47 // pred_check
        %p980 = pneg %p195
      $region50: #{fuse_module_forward.1} parent=47 // pred_check_branch
        %982 = sbr.rel (%p980) target = $region52
      $region51: #{fuse_module_forward.1} parent=47 // pred_region
        _
      $region52: #{fuse_module_forward.1} parent=47 // pred_fallthru
        _
      // Predicated region
      $region53: #{fuse_module_forward.1} parent=47 // pred_check
        %p983 = pneg %p221
      $region54: #{fuse_module_forward.1} parent=47 // pred_check_branch
        %985 = sbr.rel (%p983) target = $region56
      $region55: #{fuse_module_forward.1} parent=47 // pred_region
        _
      $region56: #{fuse_module_forward.1} parent=47 // pred_fallthru
        _
    $region48: #{fuse_module_forward.1} parent=5 // pred_fallthru
      _
    %p986 = scmp.le.s32.totalorder 2, %s15
    // Predicated region
    $region57: #{fuse_module_forward.1} parent=5 // pred_check
      %p987 = pneg %p986
    $region58: #{fuse_module_forward.1} parent=5 // pred_check_branch
      %989 = sbr.rel (%p987) target = $region60
    $region59: #{fuse_module_forward.1} parent=5 // pred_region
      %s990 = ssub.s32 %s15, 2
      // Predicated region
      $region61: #{fuse_module_forward.1} parent=59 // pred_check
        %p991 = pneg %p201
      $region62: #{fuse_module_forward.1} parent=59 // pred_check_branch
        %993 = sbr.rel (%p991) target = $region64
      $region63: #{fuse_module_forward.1} parent=59 // pred_region
        %p994 = scmp.lt.s32.totalorder %s21, 1
        %s995 = scalar_select %p994, %s21, 1
        %s996 = smul.addr %s995, 2
        %s997 = smul.addr %s996, 8
        %s998 = scalar_lea.vmem %s7, %s997
      $region64: #{fuse_module_forward.1} parent=59 // pred_fallthru
        _
      // Predicated region
      $region65: #{fuse_module_forward.1} parent=59 // pred_check
        %p999 = pneg %p227
      $region66: #{fuse_module_forward.1} parent=59 // pred_check_branch
        %1001 = sbr.rel (%p999) target = $region68
      $region67: #{fuse_module_forward.1} parent=59 // pred_region
        %p1002 = scmp.lt.s32.totalorder %s21, 1
        %s1003 = scalar_select %p1002, %s21, 1
        %s1004 = smul.addr %s1003, 2
        %s1005 = smul.addr %s1004, 8
        %s1006 = scalar_lea.vmem %s8, %s1005
      $region68: #{fuse_module_forward.1} parent=59 // pred_fallthru
        _
    $region60: #{fuse_module_forward.1} parent=5 // pred_fallthru
      _
  $region6: #{fuse_module_forward.1} parent=0 // loop_footer
    %s19 = sadd.s32 1, %s15
  $region7: #{fuse_module_forward.1} parent=0 // loop_footer_branch
    %14 = sbr.rel target = $region3
  $region8: #{fuse_module_forward.1} parent=0 // loop_exit
    _

</llo_original>
